<compile_context>
chip_gen: v7x
topology: tpu7x:2x2x1
jax: 0.10.0
libtpu: 0.0.40
codegen_flags: <defaults>
</compile_context>

<pallas_src>
import functools

import jax
import jax.numpy as jnp
from jax import lax
from jax.experimental import pallas as pl
from jax.experimental.pallas import tpu as pltpu


LANE = 128     # TPU lane width
SUBLANE = 8    # TPU sublane width


def _round_up(n, m):
    return ((n + m - 1) // m) * m


# --------------------------------------------------------------------------
# Kernel
# --------------------------------------------------------------------------
def _mlp_kernel(x_ref, z_ref,
                w1x_ref, w1z_ref, b1_ref,
                w2_ref, b2_ref,
                w3_ref, b3_ref,
                w4t_ref, b4_ref,
                out_ref):
    """One batch tile of the MLP.  Weights VMEM-resident, activations tiled."""
    cdt = w2_ref.dtype  # MXU-operand dtype (f32 default, bf16 opt-in)

    x = x_ref[...].astype(cdt)
    z = z_ref[...].astype(cdt)

    # Layer 1 (W1 split by input source -> no concat) + ReLU (f32).
    h = (jnp.dot(x, w1x_ref[...], preferred_element_type=jnp.float32)
         + jnp.dot(z, w1z_ref[...], preferred_element_type=jnp.float32)
         + b1_ref[...])
    h = jnp.maximum(h, 0.0)

    # Layer 2 + ReLU.
    h = jnp.dot(h.astype(cdt), w2_ref[...],
                preferred_element_type=jnp.float32) + b2_ref[...]
    h = jnp.maximum(h, 0.0)

    # Layer 3 + ReLU.
    h = jnp.dot(h.astype(cdt), w3_ref[...],
                preferred_element_type=jnp.float32) + b3_ref[...]
    h = jnp.maximum(h, 0.0)

    # Layer 4: [1, hp] x [tb, hp]^T -> lane-dense [1, tb] output row
    # (no 128-wide padded output slab).
    o = lax.dot_general(w4t_ref[...], h.astype(cdt),
                        dimension_numbers=(((1,), (1,)), ((), ())),
                        preferred_element_type=jnp.float32)
    out_ref[...] = (o + b4_ref[...]).astype(out_ref.dtype)


# --------------------------------------------------------------------------
# Parameter init / packing
# --------------------------------------------------------------------------
def init_params(key, x_size, z_size, n_hidden):
    """PyTorch-Linear-style uniform init; weights stored [in, out]."""
    dims = [(x_size + z_size, n_hidden),
            (n_hidden, n_hidden),
            (n_hidden, n_hidden),
            (n_hidden, 1)]
    params = []
    for fan_in, fan_out in dims:
        key, kw, kb = jax.random.split(key, 3)
        bound = 1.0 / jnp.sqrt(jnp.float32(fan_in))
        w = jax.random.uniform(kw, (fan_in, fan_out), jnp.float32, -bound, bound)
        b = jax.random.uniform(kb, (fan_out,), jnp.float32, -bound, bound)
        params.append((w, b))
    return params


def pack_params(params, x_size, z_size, dot_dtype=jnp.float32):
    """Split W1 by input source, pad hidden dim to LANE, transpose W4.

    `dot_dtype=jnp.bfloat16` halves weight VMEM and speeds up the MXU on
    v6e/v7x (requires ~1e-2 tolerances); biases always stay f32.
    """
    (w1, b1), (w2, b2), (w3, b3), (w4, b4) = params
    n_hidden = w1.shape[1]
    hp = _round_up(n_hidden, LANE)

    def pad2(a, rows, cols, dtype):
        a = jnp.asarray(a, jnp.float32)
        a2 = a.reshape((a.shape[0], -1)) if a.ndim == 2 else a.reshape(1, -1)
        out = jnp.zeros((rows, cols), jnp.float32)
        out = out.at[:a2.shape[0], :a2.shape[1]].set(a2)
        return out.astype(dtype)

    w1x = pad2(w1[:x_size], x_size, hp, dot_dtype)
    w1z = pad2(w1[x_size:], z_size, hp, dot_dtype)
    b1p = pad2(b1, 1, hp, jnp.float32)
    w2p = pad2(w2, hp, hp, dot_dtype)
    b2p = pad2(b2, 1, hp, jnp.float32)
    w3p = pad2(w3, hp, hp, dot_dtype)
    b3p = pad2(b3, 1, hp, jnp.float32)
    w4t = pad2(w4.T, 1, hp, dot_dtype)      # [1, hp], transposed
    b4p = pad2(b4, 1, 1, jnp.float32)       # [1, 1]
    return (w1x, w1z, b1p, w2p, b2p, w3p, b3p, w4t, b4p)


# --------------------------------------------------------------------------
# Spec / budget helpers
# --------------------------------------------------------------------------
def _resident_spec(shape):
    """Weight spec: constant index_map; single-buffered when supported."""
    idx_map = lambda i: (0,) * len(shape)
    if hasattr(pl, "Buffered"):
        try:
            return pl.BlockSpec(shape, idx_map,
                                pipeline_mode=pl.Buffered(1)), True
        except Exception:
            pass
    return pl.BlockSpec(shape, idx_map), False


def _vmem_budget_bytes():
    """Generation-aware VMEM budget (75% of capacity, 32 MiB..100 MiB)."""
    cap = 128 << 20
    try:
        cap = int(getattr(pltpu.get_tpu_info(), "vmem_capacity_bytes", cap))
    except Exception:
        pass
    return max(32 << 20, min((cap * 3) // 4, 100 << 20))


def _padded_bytes(a):
    r, c = a.shape
    return _round_up(r, SUBLANE) * _round_up(c, LANE) * a.dtype.itemsize


# --------------------------------------------------------------------------
# Forward wrapper
# --------------------------------------------------------------------------
@functools.partial(jax.jit, static_argnames=("max_batch_tile",))
def mi_estimation_forward(x, z, packed, max_batch_tile=4096):
    """x: [B, ...], z: [B, ...] -> [B, 1]."""
    B = x.shape[0]
    x_flat = x.reshape(B, -1)
    z_flat = z.reshape(B, -1)
    xs = x_flat.shape[1]
    zs = z_flat.shape[1]

    weights = tuple(packed)
    (w1x, w1z, b1, w2, b2, w3, b3, w4t, b4) = weights
    hp = w2.shape[0]

    # Resident weight specs (single-buffered when the jax version supports it).
    w_specs = []
    single = True
    for w in weights:
        s, ok = _resident_spec(w.shape)
        w_specs.append(s)
        single = single and ok
    w_mult = 1 if single else 2
    weight_bytes = w_mult * sum(_padded_bytes(w) for w in weights)

    # VMEM budget -> batch tile.  Per-row bytes count the double-buffered x/z
    # tiles, ~3 hidden-activation slabs (f32) and the double-buffered [1, tb]
    # output row.
    budget = _vmem_budget_bytes()
    per_row = (2 * (_round_up(xs, LANE) * x_flat.dtype.itemsize
                    + _round_up(zs, LANE) * z_flat.dtype.itemsize)
               + 3 * hp * 4
               + 2 * SUBLANE * 4)
    fixed = weight_bytes + (2 << 20)
    tb = max(SUBLANE, (budget - fixed) // per_row)
    tb = min(tb, max_batch_tile)
    # Keep >= 4 grid steps for large batches (pipelining + v7x 2-TC sharding).
    if B >= 4 * LANE:
        tb = min(tb, _round_up(pl.cdiv(B, 4), LANE))
    if tb >= B:
        tb = B                                    # single full-batch tile
    else:
        tb = max(SUBLANE, (tb // SUBLANE) * SUBLANE)
        if tb >= LANE:
            tb = (tb // LANE) * LANE              # lane-dense output rows
    num_tiles = pl.cdiv(B, tb)

    # VMEM limit: accurate estimate + margin, capped at the generation budget.
    act_bytes = 2 * tb * (_round_up(xs, LANE) * x_flat.dtype.itemsize
                          + _round_up(zs, LANE) * z_flat.dtype.itemsize)
    hid_bytes = 3 * tb * hp * 4
    out_bytes = 2 * SUBLANE * _round_up(tb, LANE) * 4
    est = weight_bytes + act_bytes + hid_bytes + out_bytes
    vmem_limit = int(min(budget, max(est + (4 << 20), 32 << 20)))

    in_specs = [pl.BlockSpec((tb, xs), lambda i: (i, 0)),
                pl.BlockSpec((tb, zs), lambda i: (i, 0))] + w_specs
    out_specs = pl.BlockSpec((1, tb), lambda i: (i, 0))

    out = pl.pallas_call(
        _mlp_kernel,
        out_shape=jax.ShapeDtypeStruct((num_tiles, tb), jnp.float32),
        grid=(num_tiles,),
        in_specs=in_specs,
        out_specs=out_specs,
        compiler_params=pltpu.CompilerParams(
            dimension_semantics=("parallel",),
            vmem_limit_bytes=vmem_limit),
    )(x_flat, z_flat, *weights)

    # Lane-dense (num_tiles, tb) slab -> (B, 1); rows past B (partial last
    # tile) are dropped here.
    return out.reshape(num_tiles * tb)[:B].reshape(B, 1)


# --------------------------------------------------------------------------
# Plain-JAX reference
# --------------------------------------------------------------------------
def reference_forward(x, z, params):
    B = x.shape[0]
    h = jnp.concatenate([x.reshape(B, -1), z.reshape(B, -1)], axis=-1)
    (w1, b1), (w2, b2), (w3, b3), (w4, b4) = params
    h = jnp.maximum(h @ w1 + b1, 0.0)
    h = jnp.maximum(h @ w2 + b2, 0.0)
    h = jnp.maximum(h @ w3 + b3, 0.0)
    return h @ w4 + b4


# --------------------------------------------------------------------------
# Test
# --------------------------------------------------------------------------
if __name__ == "__main__":
    B = 8
    x_shape = (B, 4, 4, 4)   # x_size = 64
    z_shape = (B, 32)        # z_size = 32
    n_hidden = 32

    x_size = 4 * 4 * 4
    z_size = 32

    key = jax.random.PRNGKey(0)
    kx, kz, kp = jax.random.split(key, 3)
    x = jax.random.normal(kx, x_shape, jnp.float32)
    z = jax.random.normal(kz, z_shape, jnp.float32)

    params = init_params(kp, x_size, z_size, n_hidden)
    packed = pack_params(params, x_size, z_size)
    # TODO(synk): pack_params(..., dot_dtype=jnp.bfloat16) for 2x MXU / half
    # the weight VMEM on v6e/v7x; needs ~1e-2 tolerances.

    out = jax.block_until_ready(mi_estimation_forward(x, z, packed))
    ref = reference_forward(x, z, params)

    assert out.shape == (B, 1), out.shape
    assert jnp.allclose(out, ref, atol=1e-4, rtol=1e-4), (out, ref)

    print("KERNEL_OK")
</pallas_src>

<mosaic_0001>
module attributes {stable_mosaic.version = 11 : i64} {
  func.func @_mlp_kernel(%arg0: i32, %arg1: memref<8x64xf32, #tpu.memory_space<vmem>>, %arg2: memref<8x32xf32, #tpu.memory_space<vmem>>, %arg3: memref<64x128xf32, #tpu.memory_space<vmem>>, %arg4: memref<32x128xf32, #tpu.memory_space<vmem>>, %arg5: memref<1x128xf32, #tpu.memory_space<vmem>>, %arg6: memref<128x128xf32, #tpu.memory_space<vmem>>, %arg7: memref<1x128xf32, #tpu.memory_space<vmem>>, %arg8: memref<128x128xf32, #tpu.memory_space<vmem>>, %arg9: memref<1x128xf32, #tpu.memory_space<vmem>>, %arg10: memref<1x128xf32, #tpu.memory_space<vmem>>, %arg11: memref<1x1xf32, #tpu.memory_space<vmem>>, %arg12: memref<1x8xf32, #tpu.memory_space<vmem>>) attributes {dimension_semantics = [#tpu.dimension_semantics<parallel>], iteration_bounds = array<i64: 1>, scalar_prefetch = 0 : i64, scratch_operands = 0 : i64, tpu.core_type = #tpu.core_type<tc>, window_params = [{transform_indices = @transform_0, window_bounds = array<i64: 8, 64>}, {transform_indices = @transform_1, window_bounds = array<i64: 8, 32>}, {pipeline_mode = #tpu.pipeline_mode<synchronous>, transform_indices = @transform_2, window_bounds = array<i64: 64, 128>}, {pipeline_mode = #tpu.pipeline_mode<synchronous>, transform_indices = @transform_3, window_bounds = array<i64: 32, 128>}, {pipeline_mode = #tpu.pipeline_mode<synchronous>, transform_indices = @transform_4, window_bounds = array<i64: 1, 128>}, {pipeline_mode = #tpu.pipeline_mode<synchronous>, transform_indices = @transform_5, window_bounds = array<i64: 128, 128>}, {pipeline_mode = #tpu.pipeline_mode<synchronous>, transform_indices = @transform_6, window_bounds = array<i64: 1, 128>}, {pipeline_mode = #tpu.pipeline_mode<synchronous>, transform_indices = @transform_7, window_bounds = array<i64: 128, 128>}, {pipeline_mode = #tpu.pipeline_mode<synchronous>, transform_indices = @transform_8, window_bounds = array<i64: 1, 128>}, {pipeline_mode = #tpu.pipeline_mode<synchronous>, transform_indices = @transform_9, window_bounds = array<i64: 1, 128>}, {pipeline_mode = #tpu.pipeline_mode<synchronous>, transform_indices = @transform_10, window_bounds = array<i64: 1, 1>}, {transform_indices = @transform_11, window_bounds = array<i64: 1, 8>}]} {
    %c0 = arith.constant 0 : index
    %c0_0 = arith.constant 0 : index
    %0 = vector.load %arg1[%c0, %c0_0] : memref<8x64xf32, #tpu.memory_space<vmem>>, vector<8x64xf32>
    %c0_1 = arith.constant 0 : index
    %c0_2 = arith.constant 0 : index
    %1 = vector.load %arg2[%c0_1, %c0_2] : memref<8x32xf32, #tpu.memory_space<vmem>>, vector<8x32xf32>
    %c0_3 = arith.constant 0 : index
    %c0_4 = arith.constant 0 : index
    %2 = vector.load %arg3[%c0_3, %c0_4] : memref<64x128xf32, #tpu.memory_space<vmem>>, vector<64x128xf32>
    %cst = arith.constant dense<0.000000e+00> : vector<8x128xf32>
    %3 = tpu.matmul %0, %2, %cst {dimension_numbers = #tpu.dot_dimension_numbers<[1], [0], [0], [1], [0, 0, 1, 1], [], []>} : vector<8x64xf32>, vector<64x128xf32>, vector<8x128xf32> -> vector<8x128xf32>
    %c0_5 = arith.constant 0 : index
    %c0_6 = arith.constant 0 : index
    %4 = vector.load %arg4[%c0_5, %c0_6] : memref<32x128xf32, #tpu.memory_space<vmem>>, vector<32x128xf32>
    %cst_7 = arith.constant dense<0.000000e+00> : vector<8x128xf32>
    %5 = tpu.matmul %1, %4, %cst_7 {dimension_numbers = #tpu.dot_dimension_numbers<[1], [0], [0], [1], [0, 0, 1, 1], [], []>} : vector<8x32xf32>, vector<32x128xf32>, vector<8x128xf32> -> vector<8x128xf32>
    %6 = arith.addf %3, %5 : vector<8x128xf32>
    %c0_8 = arith.constant 0 : index
    %c0_9 = arith.constant 0 : index
    %7 = vector.load %arg5[%c0_8, %c0_9] : memref<1x128xf32, #tpu.memory_space<vmem>>, vector<1x128xf32>
    %8 = vector.broadcast %7 : vector<1x128xf32> to vector<8x128xf32>
    %9 = arith.addf %6, %8 : vector<8x128xf32>
    %cst_10 = arith.constant 0.000000e+00 : f32
    %10 = vector.broadcast %cst_10 : f32 to vector<8x128xf32>
    %11 = arith.maximumf %9, %10 : vector<8x128xf32>
    %c0_11 = arith.constant 0 : index
    %c0_12 = arith.constant 0 : index
    %12 = vector.load %arg6[%c0_11, %c0_12] : memref<128x128xf32, #tpu.memory_space<vmem>>, vector<128x128xf32>
    %cst_13 = arith.constant dense<0.000000e+00> : vector<8x128xf32>
    %13 = tpu.matmul %11, %12, %cst_13 {dimension_numbers = #tpu.dot_dimension_numbers<[1], [0], [0], [1], [0, 0, 1, 1], [], []>} : vector<8x128xf32>, vector<128x128xf32>, vector<8x128xf32> -> vector<8x128xf32>
    %c0_14 = arith.constant 0 : index
    %c0_15 = arith.constant 0 : index
    %14 = vector.load %arg7[%c0_14, %c0_15] : memref<1x128xf32, #tpu.memory_space<vmem>>, vector<1x128xf32>
    %15 = vector.broadcast %14 : vector<1x128xf32> to vector<8x128xf32>
    %16 = arith.addf %13, %15 : vector<8x128xf32>
    %cst_16 = arith.constant 0.000000e+00 : f32
    %17 = vector.broadcast %cst_16 : f32 to vector<8x128xf32>
    %18 = arith.maximumf %16, %17 : vector<8x128xf32>
    %c0_17 = arith.constant 0 : index
    %c0_18 = arith.constant 0 : index
    %19 = vector.load %arg8[%c0_17, %c0_18] : memref<128x128xf32, #tpu.memory_space<vmem>>, vector<128x128xf32>
    %cst_19 = arith.constant dense<0.000000e+00> : vector<8x128xf32>
    %20 = tpu.matmul %18, %19, %cst_19 {dimension_numbers = #tpu.dot_dimension_numbers<[1], [0], [0], [1], [0, 0, 1, 1], [], []>} : vector<8x128xf32>, vector<128x128xf32>, vector<8x128xf32> -> vector<8x128xf32>
    %c0_20 = arith.constant 0 : index
    %c0_21 = arith.constant 0 : index
    %21 = vector.load %arg9[%c0_20, %c0_21] : memref<1x128xf32, #tpu.memory_space<vmem>>, vector<1x128xf32>
    %22 = vector.broadcast %21 : vector<1x128xf32> to vector<8x128xf32>
    %23 = arith.addf %20, %22 : vector<8x128xf32>
    %cst_22 = arith.constant 0.000000e+00 : f32
    %24 = vector.broadcast %cst_22 : f32 to vector<8x128xf32>
    %25 = arith.maximumf %23, %24 : vector<8x128xf32>
    %c0_23 = arith.constant 0 : index
    %c0_24 = arith.constant 0 : index
    %26 = vector.load %arg10[%c0_23, %c0_24] : memref<1x128xf32, #tpu.memory_space<vmem>>, vector<1x128xf32>
    %cst_25 = arith.constant dense<0.000000e+00> : vector<1x8xf32>
    %27 = tpu.matmul %26, %25, %cst_25 {dimension_numbers = #tpu.dot_dimension_numbers<[1], [1], [0], [0], [0, 0, 1, 0], [], []>} : vector<1x128xf32>, vector<8x128xf32>, vector<1x8xf32> -> vector<1x8xf32>
    %c0_26 = arith.constant 0 : index
    %c0_27 = arith.constant 0 : index
    %28 = vector.load %arg11[%c0_26, %c0_27] : memref<1x1xf32, #tpu.memory_space<vmem>>, vector<1x1xf32>
    %29 = vector.broadcast %28 : vector<1x1xf32> to vector<1x8xf32>
    %30 = arith.addf %27, %29 : vector<1x8xf32>
    %c0_28 = arith.constant 0 : index
    %c0_29 = arith.constant 0 : index
    %31 = vector.load %arg12[%c0_28, %c0_29] : memref<1x8xf32, #tpu.memory_space<vmem>>, vector<1x8xf32>
    tpu.vector_store %arg12[%c0_28, %c0_29], %30 {strides = array<i32>} : memref<1x8xf32, #tpu.memory_space<vmem>>, vector<1x8xf32>,
    return
  }
  func.func @transform_0(%arg0: i32) -> (i32, i32) {
    %c0_i32 = arith.constant 0 : i32
    %c0_i32_0 = arith.constant 0 : i32
    return %arg0, %c0_i32 : i32, i32
  }
  func.func @transform_1(%arg0: i32) -> (i32, i32) {
    %c0_i32 = arith.constant 0 : i32
    %c0_i32_0 = arith.constant 0 : i32
    return %arg0, %c0_i32 : i32, i32
  }
  func.func @transform_2(%arg0: i32) -> (i32, i32) {
    %c0_i32 = arith.constant 0 : i32
    %c0_i32_0 = arith.constant 0 : i32
    %c0_i32_1 = arith.constant 0 : i32
    return %c0_i32, %c0_i32_0 : i32, i32
  }
  func.func @transform_3(%arg0: i32) -> (i32, i32) {
    %c0_i32 = arith.constant 0 : i32
    %c0_i32_0 = arith.constant 0 : i32
    %c0_i32_1 = arith.constant 0 : i32
    return %c0_i32, %c0_i32_0 : i32, i32
  }
  func.func @transform_4(%arg0: i32) -> (i32, i32) {
    %c0_i32 = arith.constant 0 : i32
    %c0_i32_0 = arith.constant 0 : i32
    %c0_i32_1 = arith.constant 0 : i32
    return %c0_i32, %c0_i32_0 : i32, i32
  }
  func.func @transform_5(%arg0: i32) -> (i32, i32) {
    %c0_i32 = arith.constant 0 : i32
    %c0_i32_0 = arith.constant 0 : i32
    %c0_i32_1 = arith.constant 0 : i32
    return %c0_i32, %c0_i32_0 : i32, i32
  }
  func.func @transform_6(%arg0: i32) -> (i32, i32) {
    %c0_i32 = arith.constant 0 : i32
    %c0_i32_0 = arith.constant 0 : i32
    %c0_i32_1 = arith.constant 0 : i32
    return %c0_i32, %c0_i32_0 : i32, i32
  }
  func.func @transform_7(%arg0: i32) -> (i32, i32) {
    %c0_i32 = arith.constant 0 : i32
    %c0_i32_0 = arith.constant 0 : i32
    %c0_i32_1 = arith.constant 0 : i32
    return %c0_i32, %c0_i32_0 : i32, i32
  }
  func.func @transform_8(%arg0: i32) -> (i32, i32) {
    %c0_i32 = arith.constant 0 : i32
    %c0_i32_0 = arith.constant 0 : i32
    %c0_i32_1 = arith.constant 0 : i32
    return %c0_i32, %c0_i32_0 : i32, i32
  }
  func.func @transform_9(%arg0: i32) -> (i32, i32) {
    %c0_i32 = arith.constant 0 : i32
    %c0_i32_0 = arith.constant 0 : i32
    %c0_i32_1 = arith.constant 0 : i32
    return %c0_i32, %c0_i32_0 : i32, i32
  }
  func.func @transform_10(%arg0: i32) -> (i32, i32) {
    %c0_i32 = arith.constant 0 : i32
    %c0_i32_0 = arith.constant 0 : i32
    %c0_i32_1 = arith.constant 0 : i32
    return %c0_i32, %c0_i32_0 : i32, i32
  }
  func.func @transform_11(%arg0: i32) -> (i32, i32) {
    %c0_i32 = arith.constant 0 : i32
    %c0_i32_0 = arith.constant 0 : i32
    return %arg0, %c0_i32 : i32, i32
  }
}

</mosaic_0001>

<llo_original>
// kernel: mi_estimation_forward.1
$region0: #{mi_estimation_forward.1}
  #allocation0 [shape = 'u32[]', space=smem, size = 0x4, offset = 0x4, fixed_abs, tag = 'smem constant byte address 0x4 - core index']
  #allocation1 [shape = 'u32[144,128]{1,0:T(1,128)}', space=vmem, size = 0x12000, scoped, tag = 'internal scratch']
  #allocation2 [shape = 'f32[1,1]{1,0:T(1,128)S(1)}', space=vmem, size = 0x200, scoped, tag = 'scoped memory for mi_estimation_forward.1']
  %s0 = inlined_call_operand.vmem [shape: f32[8,64], index: 0, kind: input, shape index: {}]
  %s1 = inlined_call_operand.vmem [shape: f32[8,32], index: 1, kind: input, shape index: {}]
  %s2 = inlined_call_operand.vmem [shape: f32[64,128], index: 2, kind: input, shape index: {}]
  %s3 = inlined_call_operand.hbm [shape: f32[32,128], index: 3, kind: input, shape index: {}]
  %s4 = inlined_call_operand.vmem [shape: f32[1,128], index: 4, kind: input, shape index: {}]
  %s5 = inlined_call_operand.hbm [shape: f32[128,128], index: 5, kind: input, shape index: {}]
  %s6 = inlined_call_operand.vmem [shape: f32[1,128], index: 6, kind: input, shape index: {}]
  %s7 = inlined_call_operand.hbm [shape: f32[128,128], index: 7, kind: input, shape index: {}]
  %s8 = inlined_call_operand.vmem [shape: f32[1,128], index: 8, kind: input, shape index: {}]
  %s9 = inlined_call_operand.vmem [shape: f32[1,128], index: 9, kind: input, shape index: {}]
  %s10 = inlined_call_operand.<no memory space> [shape: f32[1,1], index: 10, kind: input, shape index: {}]
  %s11 = inlined_call_operand.hbm [shape: f32[1,8], index: 11, kind: output, shape index: {}]
  %s12 = sld [smem:[#allocation0]]
  $region66: #{mi_estimation_forward.1} parent=0
    _
  %s14 = ssub.s32 1, %s12
  %s15 = scalar_select 0, %s14, %s12
  %v16 = vstv %s10
  %17 = vst [vmem:[#allocation2] sm:$0x1] %v16
  $region1: #{mi_estimation_forward.1} parent=0
    #allocation3 [shape = 'u8[16384]{0}', space=vmem, size = 0x4000, scoped, tag = 'input window, operand 3, single buffered']
    #allocation4 [shape = 's32[1]{0}', space=sflag, size = 0x4, scoped, tag = 'scoped memory for mi_estimation_forward.1']
    #allocation5 [shape = 's32[1]{0}', space=sflag, size = 0x4, scoped, tag = 'scoped memory for mi_estimation_forward.1']
    #allocation6 [shape = 'u8[65536]{0}', space=vmem, size = 0x10000, scoped, tag = 'input window, operand 5, single buffered']
    #allocation7 [shape = 's32[1]{0}', space=sflag, size = 0x4, scoped, tag = 'scoped memory for mi_estimation_forward.1']
    #allocation8 [shape = 'u8[65536]{0}', space=vmem, size = 0x10000, scoped, tag = 'input window, operand 7, single buffered']
    #allocation9 [shape = 'u8[512]{0}', space=vmem, size = 0x400, scoped, tag = 'output window, operand 0, single buffered']
    %18 = vsyncpa [#allocation4], 0
    %19 = vsyncpa [#allocation7], 0
    %20 = vsyncpa [#allocation5], 0
    // Predicated region
    $region2: #{mi_estimation_forward.1} parent=1 // pred_check
      _
    $region3: #{mi_estimation_forward.1} parent=1 // pred_check_branch
      %22 = sbr.rel (0) target = $region5
    $region4: #{mi_estimation_forward.1} parent=1 // pred_region
      _
    $region5: #{mi_estimation_forward.1} parent=1 // pred_fallthru
      _
    // Predicated region
    $region6: #{mi_estimation_forward.1} parent=1 // pred_check
      _
    $region7: #{mi_estimation_forward.1} parent=1 // pred_check_branch
      %24 = sbr.rel (0) target = $region9
    $region8: #{mi_estimation_forward.1} parent=1 // pred_region
      _
    $region9: #{mi_estimation_forward.1} parent=1 // pred_fallthru
      _
    // Predicated region
    $region10: #{mi_estimation_forward.1} parent=1 // pred_check
      _
    $region11: #{mi_estimation_forward.1} parent=1 // pred_check_branch
      %26 = sbr.rel (0) target = $region13
    $region12: #{mi_estimation_forward.1} parent=1 // pred_region
      _
    $region13: #{mi_estimation_forward.1} parent=1 // pred_fallthru
      _
    // Predicated region
    $region14: #{mi_estimation_forward.1} parent=1 // pred_check
      _
    $region15: #{mi_estimation_forward.1} parent=1 // pred_check_branch
      %28 = sbr.rel (0) target = $region17
    $region16: #{mi_estimation_forward.1} parent=1 // pred_region
      %s30 = ssub.s32 512, 512
      %31 = vsyncadd [#allocation4], %s30
      %s32 = sshll.u32 [#allocation3], 4
      %s33 = int_to_ptr.vmem [resolvable:$true] %s32
      %38 = dma.hbm_to_vmem [thread:$0]  %s3, 512, %s33, [#allocation4], 128, 128, 8
    $region17: #{mi_estimation_forward.1} parent=1 // pred_fallthru
      _
    // Predicated region
    $region18: #{mi_estimation_forward.1} parent=1 // pred_check
      _
    $region19: #{mi_estimation_forward.1} parent=1 // pred_check_branch
      %40 = sbr.rel (0) target = $region21
    $region20: #{mi_estimation_forward.1} parent=1 // pred_region
      _
    $region21: #{mi_estimation_forward.1} parent=1 // pred_fallthru
      _
    // Predicated region
    $region22: #{mi_estimation_forward.1} parent=1 // pred_check
      _
    $region23: #{mi_estimation_forward.1} parent=1 // pred_check_branch
      %42 = sbr.rel (0) target = $region25
    $region24: #{mi_estimation_forward.1} parent=1 // pred_region
      %s44 = ssub.s32 2048, 2048
      %45 = vsyncadd [#allocation7], %s44
      %s46 = sshll.u32 [#allocation6], 4
      %s47 = int_to_ptr.vmem [resolvable:$true] %s46
      %52 = dma.hbm_to_vmem [thread:$0]  %s5, 2048, %s47, [#allocation7], 128, 128, 8
    $region25: #{mi_estimation_forward.1} parent=1 // pred_fallthru
      _
    // Predicated region
    $region26: #{mi_estimation_forward.1} parent=1 // pred_check
      _
    $region27: #{mi_estimation_forward.1} parent=1 // pred_check_branch
      %54 = sbr.rel (0) target = $region29
    $region28: #{mi_estimation_forward.1} parent=1 // pred_region
      _
    $region29: #{mi_estimation_forward.1} parent=1 // pred_fallthru
      _
    // Predicated region
    $region30: #{mi_estimation_forward.1} parent=1 // pred_check
      _
    $region31: #{mi_estimation_forward.1} parent=1 // pred_check_branch
      %56 = sbr.rel (0) target = $region33
    $region32: #{mi_estimation_forward.1} parent=1 // pred_region
      %s58 = ssub.s32 2048, 2048
      %59 = vsyncadd [#allocation7], %s58
      %s60 = sshll.u32 [#allocation8], 4
      %s61 = int_to_ptr.vmem [resolvable:$true] %s60
      %66 = dma.hbm_to_vmem [thread:$0]  %s7, 2048, %s61, [#allocation7], 128, 128, 8
    $region33: #{mi_estimation_forward.1} parent=1 // pred_fallthru
      _
    // Predicated region
    $region34: #{mi_estimation_forward.1} parent=1 // pred_check
      _
    $region35: #{mi_estimation_forward.1} parent=1 // pred_check_branch
      %68 = sbr.rel (0) target = $region37
    $region36: #{mi_estimation_forward.1} parent=1 // pred_region
      _
    $region37: #{mi_estimation_forward.1} parent=1 // pred_fallthru
      _
    // Predicated region
    $region38: #{mi_estimation_forward.1} parent=1 // pred_check
      _
    $region39: #{mi_estimation_forward.1} parent=1 // pred_check_branch
      %70 = sbr.rel (0) target = $region41
    $region40: #{mi_estimation_forward.1} parent=1 // pred_region
      _
    $region41: #{mi_estimation_forward.1} parent=1 // pred_fallthru
      _
    // Predicated region
    $region42: #{mi_estimation_forward.1} parent=1 // pred_check
      _
    $region43: #{mi_estimation_forward.1} parent=1 // pred_check_branch
      %72 = sbr.rel (0) target = $region45
    $region44: #{mi_estimation_forward.1} parent=1 // pred_region
      _
    $region45: #{mi_estimation_forward.1} parent=1 // pred_fallthru
      _
    // Predicated region
    $region46: #{mi_estimation_forward.1} parent=1 // pred_check
      _
    $region47: #{mi_estimation_forward.1} parent=1 // pred_check_branch
      %74 = sbr.rel (0) target = $region49
    $region48: #{mi_estimation_forward.1} parent=1 // pred_region
      %75 = dma.done [#allocation4], 512
    $region49: #{mi_estimation_forward.1} parent=1 // pred_fallthru
      _
    // Predicated region
    $region50: #{mi_estimation_forward.1} parent=1 // pred_check
      _
    $region51: #{mi_estimation_forward.1} parent=1 // pred_check_branch
      %77 = sbr.rel (0) target = $region53
    $region52: #{mi_estimation_forward.1} parent=1 // pred_region
      %78 = dma.done [#allocation7], 2048
    $region53: #{mi_estimation_forward.1} parent=1 // pred_fallthru
      _
    // Predicated region
    $region54: #{mi_estimation_forward.1} parent=1 // pred_check
      _
    $region55: #{mi_estimation_forward.1} parent=1 // pred_check_branch
      %80 = sbr.rel (0) target = $region57
    $region56: #{mi_estimation_forward.1} parent=1 // pred_region
      %81 = dma.done [#allocation7], 2048
    $region57: #{mi_estimation_forward.1} parent=1 // pred_fallthru
      _
    %v82 = vld [vmem:[%s0] sm:$0xff]
    %v83 = vld [vmem:[%s1] sm:$0xff]
    %v84 = vld [vmem:[%s2] sm:$0xff]
    %v85 = vld [vmem:[%s2 + $0x8] sm:$0xff]
    %v86 = vld [vmem:[%s2 + $0x10] sm:$0xff]
    %v87 = vld [vmem:[%s2 + $0x18] sm:$0xff]
    %v88 = vld [vmem:[%s2 + $0x20] sm:$0xff]
    %v89 = vld [vmem:[%s2 + $0x28] sm:$0xff]
    %v90 = vld [vmem:[%s2 + $0x30] sm:$0xff]
    %v91 = vld [vmem:[%s2 + $0x38] sm:$0xff]
    %v92 = vld [vmem:[#allocation3] sm:$0xff]
    %v93 = vld [vmem:[#allocation3 + $0x8] sm:$0xff]
    %v94 = vld [vmem:[#allocation3 + $0x10] sm:$0xff]
    %v95 = vld [vmem:[#allocation3 + $0x18] sm:$0xff]
    %vm96 = vcmask 261120
    %v98 = vsel %vm96, %v83, 0
    %100 = vmatprep.subr.mxu0 0.0
    %101 = vmatpush1.msra.mxu0 %v92
    %102 = vmatprep.subr.mxu0 0.0
    %103 = vmatpush1.msra.mxu0 %v93
    %104 = vmatprep.subr.mxu0 0.0
    %105 = vmatpush1.msra.mxu0 %v94
    %106 = vmatprep.subr.mxu0 0.0
    %107 = vmatpush1.msra.mxu0 %v95
    %108 = vmatprep.subr.mxu0 0.0
    %109 = vmatpush1.msra.mxu0 0.0
    %110 = vmatprep.subr.mxu0 0.0
    %111 = vmatpush1.msra.mxu0 0.0
    %112 = vmatprep.subr.mxu0 0.0
    %113 = vmatpush1.msra.mxu0 0.0
    %114 = vmatprep.subr.mxu0 0.0
    %115 = vmatpush1.msra.mxu0 0.0
    %116 = vmatprep.subr.mxu0 0.0
    %117 = vmatpush1.msra.mxu0 0.0
    %118 = vmatprep.subr.mxu0 0.0
    %119 = vmatpush1.msra.mxu0 0.0
    %120 = vmatprep.subr.mxu0 0.0
    %121 = vmatpush1.msra.mxu0 0.0
    %122 = vmatprep.subr.mxu0 0.0
    %123 = vmatpush1.msra.mxu0 0.0
    %124 = vmatprep.subr.mxu0 0.0
    %125 = vmatpush1.msra.mxu0 0.0
    %126 = vmatprep.subr.mxu0 0.0
    %127 = vmatpush1.msra.mxu0 0.0
    %128 = vmatprep.subr.mxu0 0.0
    %129 = vmatpush1.msra.mxu0 0.0
    %130 = vmatprep.subr.mxu0 0.0
    %131 = vmatpush1.msra.mxu0 0.0
    %132 = vmatprep.subr.mxu0 0.0
    %133 = vmatpush1.msra.mxu0 0.0
    %134 = vmatprep.subr.mxu0 0.0
    %135 = vmatpush1.msra.mxu0 0.0
    %136 = vmatprep.subr.mxu0 0.0
    %137 = vmatpush1.msra.mxu0 0.0
    %138 = vmatprep.subr.mxu0 0.0
    %139 = vmatpush1.msra.mxu0 0.0
    %140 = vmatprep.subr.mxu0 0.0
    %141 = vmatpush1.msra.mxu0 0.0
    %142 = vmatprep.subr.mxu0 0.0
    %143 = vmatpush1.msra.mxu0 0.0
    %144 = vmatprep.subr.mxu0 0.0
    %145 = vmatpush1.msra.mxu0 0.0
    %146 = vmatprep.subr.mxu0 0.0
    %147 = vmatpush1.msra.mxu0 0.0
    %148 = vmatprep.subr.mxu0 0.0
    %149 = vmatpush1.msra.mxu0 0.0
    %150 = vmatprep.subr.mxu0 0.0
    %151 = vmatpush1.msra.mxu0 0.0
    %152 = vmatprep.subr.mxu0 0.0
    %153 = vmatpush1.msra.mxu0 0.0
    %154 = vmatprep.subr.mxu0 0.0
    %155 = vmatpush1.msra.mxu0 0.0
    %156 = vmatprep.subr.mxu0 0.0
    %157 = vmatpush1.msra.mxu0 0.0
    %158 = vmatprep.subr.mxu0 0.0
    %159 = vmatpush1.msra.mxu0 0.0
    %160 = vmatprep.subr.mxu0 0.0
    %161 = vmatpush1.msra.mxu0 0.0
    %162 = vmatprep.subr.mxu0 0.0
    %163 = vmatpush1.msra.mxu0 0.0
    %164 = vmatprep.mubr.f32.mxu0 0.0
    %165 = vmatmul.mubr.f32.gmra.mrb[0].mxu0 %v98
    %v166 = vpop.f32.mrb[0].mxu0
    %v167 = vadd.f32 0.0, %v166
    %v168 = vpop.f32.mrb[0].mxu0
    %169 = vdwg.mxu0
    %vm170 = vcmask 523264
    %v172 = vsel %vm170, %v82, 0
    %174 = vmatprep.subr.mxu0 0.0
    %175 = vmatpush1.msra.mxu0 %v84
    %176 = vmatprep.subr.mxu0 0.0
    %177 = vmatpush1.msra.mxu0 %v85
    %178 = vmatprep.subr.mxu0 0.0
    %179 = vmatpush1.msra.mxu0 %v86
    %180 = vmatprep.subr.mxu0 0.0
    %181 = vmatpush1.msra.mxu0 %v87
    %182 = vmatprep.subr.mxu0 0.0
    %183 = vmatpush1.msra.mxu0 %v88
    %184 = vmatprep.subr.mxu0 0.0
    %185 = vmatpush1.msra.mxu0 %v89
    %186 = vmatprep.subr.mxu0 0.0
    %187 = vmatpush1.msra.mxu0 %v90
    %188 = vmatprep.subr.mxu0 0.0
    %189 = vmatpush1.msra.mxu0 %v91
    %190 = vmatprep.subr.mxu0 0.0
    %191 = vmatpush1.msra.mxu0 0.0
    %192 = vmatprep.subr.mxu0 0.0
    %193 = vmatpush1.msra.mxu0 0.0
    %194 = vmatprep.subr.mxu0 0.0
    %195 = vmatpush1.msra.mxu0 0.0
    %196 = vmatprep.subr.mxu0 0.0
    %197 = vmatpush1.msra.mxu0 0.0
    %198 = vmatprep.subr.mxu0 0.0
    %199 = vmatpush1.msra.mxu0 0.0
    %200 = vmatprep.subr.mxu0 0.0
    %201 = vmatpush1.msra.mxu0 0.0
    %202 = vmatprep.subr.mxu0 0.0
    %203 = vmatpush1.msra.mxu0 0.0
    %204 = vmatprep.subr.mxu0 0.0
    %205 = vmatpush1.msra.mxu0 0.0
    %206 = vmatprep.subr.mxu0 0.0
    %207 = vmatpush1.msra.mxu0 0.0
    %208 = vmatprep.subr.mxu0 0.0
    %209 = vmatpush1.msra.mxu0 0.0
    %210 = vmatprep.subr.mxu0 0.0
    %211 = vmatpush1.msra.mxu0 0.0
    %212 = vmatprep.subr.mxu0 0.0
    %213 = vmatpush1.msra.mxu0 0.0
    %214 = vmatprep.subr.mxu0 0.0
    %215 = vmatpush1.msra.mxu0 0.0
    %216 = vmatprep.subr.mxu0 0.0
    %217 = vmatpush1.msra.mxu0 0.0
    %218 = vmatprep.subr.mxu0 0.0
    %219 = vmatpush1.msra.mxu0 0.0
    %220 = vmatprep.subr.mxu0 0.0
    %221 = vmatpush1.msra.mxu0 0.0
    %222 = vmatprep.subr.mxu0 0.0
    %223 = vmatpush1.msra.mxu0 0.0
    %224 = vmatprep.subr.mxu0 0.0
    %225 = vmatpush1.msra.mxu0 0.0
    %226 = vmatprep.subr.mxu0 0.0
    %227 = vmatpush1.msra.mxu0 0.0
    %228 = vmatprep.subr.mxu0 0.0
    %229 = vmatpush1.msra.mxu0 0.0
    %230 = vmatprep.subr.mxu0 0.0
    %231 = vmatpush1.msra.mxu0 0.0
    %232 = vmatprep.subr.mxu0 0.0
    %233 = vmatpush1.msra.mxu0 0.0
    %234 = vmatprep.subr.mxu0 0.0
    %235 = vmatpush1.msra.mxu0 0.0
    %236 = vmatprep.subr.mxu0 0.0
    %237 = vmatpush1.msra.mxu0 0.0
    %238 = vmatprep.mubr.f32.mxu0 0.0
    %239 = vmatmul.mubr.f32.gmra.mrb[0].mxu0 %v172
    %v240 = vpop.f32.mrb[0].mxu0
    %v241 = vadd.f32 %v167, %v240
    %v242 = vpop.f32.mrb[0].mxu0
    %243 = vdwg.mxu0
    %v244 = vld [vmem:[%s4] sm:$0x1]
    %v246 = vlaneseq
    %v247 = vshrl.u32 %v246, 7
    %v248 = vsub.s32 0, %v247
    %v249 = vrot.slane %v244, %v248
    %v251 = vadd.f32 %v241, %v249
    %v252 = vmax.f32 %v251, 0.0
    %v253 = vld [vmem:[#allocation6] sm:$0xff]
    %v254 = vld [vmem:[#allocation6 + $0x8] sm:$0xff]
    %v255 = vld [vmem:[#allocation6 + $0x10] sm:$0xff]
    %v256 = vld [vmem:[#allocation6 + $0x18] sm:$0xff]
    %v257 = vld [vmem:[#allocation6 + $0x20] sm:$0xff]
    %v258 = vld [vmem:[#allocation6 + $0x28] sm:$0xff]
    %v259 = vld [vmem:[#allocation6 + $0x30] sm:$0xff]
    %v260 = vld [vmem:[#allocation6 + $0x38] sm:$0xff]
    %v261 = vld [vmem:[#allocation6 + $0x40] sm:$0xff]
    %v262 = vld [vmem:[#allocation6 + $0x48] sm:$0xff]
    %v263 = vld [vmem:[#allocation6 + $0x50] sm:$0xff]
    %v264 = vld [vmem:[#allocation6 + $0x58] sm:$0xff]
    %v265 = vld [vmem:[#allocation6 + $0x60] sm:$0xff]
    %v266 = vld [vmem:[#allocation6 + $0x68] sm:$0xff]
    %v267 = vld [vmem:[#allocation6 + $0x70] sm:$0xff]
    %v268 = vld [vmem:[#allocation6 + $0x78] sm:$0xff]
    %v269 = vld [vmem:[%s6] sm:$0x1]
    %v271 = vlaneseq
    %v272 = vshrl.u32 %v271, 7
    %v273 = vsub.s32 0, %v272
    %v274 = vrot.slane %v269, %v273
    %276 = vmatprep.subr.mxu0 0.0
    %277 = vmatpush1.msra.mxu0 %v253
    %278 = vmatprep.subr.mxu0 0.0
    %279 = vmatpush1.msra.mxu0 %v254
    %280 = vmatprep.subr.mxu0 0.0
    %281 = vmatpush1.msra.mxu0 %v255
    %282 = vmatprep.subr.mxu0 0.0
    %283 = vmatpush1.msra.mxu0 %v256
    %284 = vmatprep.subr.mxu0 0.0
    %285 = vmatpush1.msra.mxu0 %v257
    %286 = vmatprep.subr.mxu0 0.0
    %287 = vmatpush1.msra.mxu0 %v258
    %288 = vmatprep.subr.mxu0 0.0
    %289 = vmatpush1.msra.mxu0 %v259
    %290 = vmatprep.subr.mxu0 0.0
    %291 = vmatpush1.msra.mxu0 %v260
    %292 = vmatprep.subr.mxu0 0.0
    %293 = vmatpush1.msra.mxu0 %v261
    %294 = vmatprep.subr.mxu0 0.0
    %295 = vmatpush1.msra.mxu0 %v262
    %296 = vmatprep.subr.mxu0 0.0
    %297 = vmatpush1.msra.mxu0 %v263
    %298 = vmatprep.subr.mxu0 0.0
    %299 = vmatpush1.msra.mxu0 %v264
    %300 = vmatprep.subr.mxu0 0.0
    %301 = vmatpush1.msra.mxu0 %v265
    %302 = vmatprep.subr.mxu0 0.0
    %303 = vmatpush1.msra.mxu0 %v266
    %304 = vmatprep.subr.mxu0 0.0
    %305 = vmatpush1.msra.mxu0 %v267
    %306 = vmatprep.subr.mxu0 0.0
    %307 = vmatpush1.msra.mxu0 %v268
    %308 = vmatprep.subr.mxu0 0.0
    %309 = vmatpush1.msra.mxu0 0.0
    %310 = vmatprep.subr.mxu0 0.0
    %311 = vmatpush1.msra.mxu0 0.0
    %312 = vmatprep.subr.mxu0 0.0
    %313 = vmatpush1.msra.mxu0 0.0
    %314 = vmatprep.subr.mxu0 0.0
    %315 = vmatpush1.msra.mxu0 0.0
    %316 = vmatprep.subr.mxu0 0.0
    %317 = vmatpush1.msra.mxu0 0.0
    %318 = vmatprep.subr.mxu0 0.0
    %319 = vmatpush1.msra.mxu0 0.0
    %320 = vmatprep.subr.mxu0 0.0
    %321 = vmatpush1.msra.mxu0 0.0
    %322 = vmatprep.subr.mxu0 0.0
    %323 = vmatpush1.msra.mxu0 0.0
    %324 = vmatprep.subr.mxu0 0.0
    %325 = vmatpush1.msra.mxu0 0.0
    %326 = vmatprep.subr.mxu0 0.0
    %327 = vmatpush1.msra.mxu0 0.0
    %328 = vmatprep.subr.mxu0 0.0
    %329 = vmatpush1.msra.mxu0 0.0
    %330 = vmatprep.subr.mxu0 0.0
    %331 = vmatpush1.msra.mxu0 0.0
    %332 = vmatprep.subr.mxu0 0.0
    %333 = vmatpush1.msra.mxu0 0.0
    %334 = vmatprep.subr.mxu0 0.0
    %335 = vmatpush1.msra.mxu0 0.0
    %336 = vmatprep.subr.mxu0 0.0
    %337 = vmatpush1.msra.mxu0 0.0
    %338 = vmatprep.subr.mxu0 0.0
    %339 = vmatpush1.msra.mxu0 0.0
    %340 = vmatprep.mubr.f32.mxu0 0.0
    %341 = vmatmul.mubr.f32.gmra.mrb[0].mxu0 %v252
    %v342 = vpop.f32.mrb[0].mxu0
    %v343 = vadd.f32 %v274, %v342
    %v344 = vpop.f32.mrb[0].mxu0
    %345 = vdwg.mxu0
    %v346 = vmax.f32 %v343, 0.0
    %v347 = vld [vmem:[#allocation8] sm:$0xff]
    %v348 = vld [vmem:[#allocation8 + $0x8] sm:$0xff]
    %v349 = vld [vmem:[#allocation8 + $0x10] sm:$0xff]
    %v350 = vld [vmem:[#allocation8 + $0x18] sm:$0xff]
    %v351 = vld [vmem:[#allocation8 + $0x20] sm:$0xff]
    %v352 = vld [vmem:[#allocation8 + $0x28] sm:$0xff]
    %v353 = vld [vmem:[#allocation8 + $0x30] sm:$0xff]
    %v354 = vld [vmem:[#allocation8 + $0x38] sm:$0xff]
    %v355 = vld [vmem:[#allocation8 + $0x40] sm:$0xff]
    %v356 = vld [vmem:[#allocation8 + $0x48] sm:$0xff]
    %v357 = vld [vmem:[#allocation8 + $0x50] sm:$0xff]
    %v358 = vld [vmem:[#allocation8 + $0x58] sm:$0xff]
    %v359 = vld [vmem:[#allocation8 + $0x60] sm:$0xff]
    %v360 = vld [vmem:[#allocation8 + $0x68] sm:$0xff]
    %v361 = vld [vmem:[#allocation8 + $0x70] sm:$0xff]
    %v362 = vld [vmem:[#allocation8 + $0x78] sm:$0xff]
    %v363 = vld [vmem:[%s8] sm:$0x1]
    %v365 = vlaneseq
    %v366 = vshrl.u32 %v365, 7
    %v367 = vsub.s32 0, %v366
    %v368 = vrot.slane %v363, %v367
    %370 = vmatprep.subr.mxu0 0.0
    %371 = vmatpush1.msra.mxu0 %v347
    %372 = vmatprep.subr.mxu0 0.0
    %373 = vmatpush1.msra.mxu0 %v348
    %374 = vmatprep.subr.mxu0 0.0
    %375 = vmatpush1.msra.mxu0 %v349
    %376 = vmatprep.subr.mxu0 0.0
    %377 = vmatpush1.msra.mxu0 %v350
    %378 = vmatprep.subr.mxu0 0.0
    %379 = vmatpush1.msra.mxu0 %v351
    %380 = vmatprep.subr.mxu0 0.0
    %381 = vmatpush1.msra.mxu0 %v352
    %382 = vmatprep.subr.mxu0 0.0
    %383 = vmatpush1.msra.mxu0 %v353
    %384 = vmatprep.subr.mxu0 0.0
    %385 = vmatpush1.msra.mxu0 %v354
    %386 = vmatprep.subr.mxu0 0.0
    %387 = vmatpush1.msra.mxu0 %v355
    %388 = vmatprep.subr.mxu0 0.0
    %389 = vmatpush1.msra.mxu0 %v356
    %390 = vmatprep.subr.mxu0 0.0
    %391 = vmatpush1.msra.mxu0 %v357
    %392 = vmatprep.subr.mxu0 0.0
    %393 = vmatpush1.msra.mxu0 %v358
    %394 = vmatprep.subr.mxu0 0.0
    %395 = vmatpush1.msra.mxu0 %v359
    %396 = vmatprep.subr.mxu0 0.0
    %397 = vmatpush1.msra.mxu0 %v360
    %398 = vmatprep.subr.mxu0 0.0
    %399 = vmatpush1.msra.mxu0 %v361
    %400 = vmatprep.subr.mxu0 0.0
    %401 = vmatpush1.msra.mxu0 %v362
    %402 = vmatprep.subr.mxu0 0.0
    %403 = vmatpush1.msra.mxu0 0.0
    %404 = vmatprep.subr.mxu0 0.0
    %405 = vmatpush1.msra.mxu0 0.0
    %406 = vmatprep.subr.mxu0 0.0
    %407 = vmatpush1.msra.mxu0 0.0
    %408 = vmatprep.subr.mxu0 0.0
    %409 = vmatpush1.msra.mxu0 0.0
    %410 = vmatprep.subr.mxu0 0.0
    %411 = vmatpush1.msra.mxu0 0.0
    %412 = vmatprep.subr.mxu0 0.0
    %413 = vmatpush1.msra.mxu0 0.0
    %414 = vmatprep.subr.mxu0 0.0
    %415 = vmatpush1.msra.mxu0 0.0
    %416 = vmatprep.subr.mxu0 0.0
    %417 = vmatpush1.msra.mxu0 0.0
    %418 = vmatprep.subr.mxu0 0.0
    %419 = vmatpush1.msra.mxu0 0.0
    %420 = vmatprep.subr.mxu0 0.0
    %421 = vmatpush1.msra.mxu0 0.0
    %422 = vmatprep.subr.mxu0 0.0
    %423 = vmatpush1.msra.mxu0 0.0
    %424 = vmatprep.subr.mxu0 0.0
    %425 = vmatpush1.msra.mxu0 0.0
    %426 = vmatprep.subr.mxu0 0.0
    %427 = vmatpush1.msra.mxu0 0.0
    %428 = vmatprep.subr.mxu0 0.0
    %429 = vmatpush1.msra.mxu0 0.0
    %430 = vmatprep.subr.mxu0 0.0
    %431 = vmatpush1.msra.mxu0 0.0
    %432 = vmatprep.subr.mxu0 0.0
    %433 = vmatpush1.msra.mxu0 0.0
    %434 = vmatprep.mubr.f32.mxu0 0.0
    %435 = vmatmul.mubr.f32.gmra.mrb[0].mxu0 %v346
    %v436 = vpop.f32.mrb[0].mxu0
    %v437 = vadd.f32 %v368, %v436
    %v438 = vpop.f32.mrb[0].mxu0
    %439 = vdwg.mxu0
    %v440 = vmax.f32 %v437, 0.0
    %v441 = vld [vmem:[%s9] sm:$0x1]
    %v442 = vld [vmem:[#allocation2] sm:$0x1]
    %444 = vset.pattern.permute.xlu0 0
    %445 = vperm.xlu0 %444, %v442
    %v446 = vpop.permute.xlu0 %445
    %v448 = vlaneseq
    %v449 = vshrl.u32 %v448, 7
    %v450 = vsub.s32 0, %v449
    %v451 = vrot.slane %v446, %v450
    %452 = vmatprep.subr.mxu0 0.0
    %453 = vmatpush1.xpose.msra.mxu0 %v440
    %454 = vmatprep.subr.mxu0 0.0
    %455 = vmatpush1.xpose.msra.mxu0 0.0
    %456 = vmatprep.subr.mxu0 0.0
    %457 = vmatpush1.xpose.msra.mxu0 0.0
    %458 = vmatprep.subr.mxu0 0.0
    %459 = vmatpush1.xpose.msra.mxu0 0.0
    %460 = vmatprep.subr.mxu0 0.0
    %461 = vmatpush1.xpose.msra.mxu0 0.0
    %462 = vmatprep.subr.mxu0 0.0
    %463 = vmatpush1.xpose.msra.mxu0 0.0
    %464 = vmatprep.subr.mxu0 0.0
    %465 = vmatpush1.xpose.msra.mxu0 0.0
    %466 = vmatprep.subr.mxu0 0.0
    %467 = vmatpush1.xpose.msra.mxu0 0.0
    %468 = vmatprep.subr.mxu0 0.0
    %469 = vmatpush1.xpose.msra.mxu0 0.0
    %470 = vmatprep.subr.mxu0 0.0
    %471 = vmatpush1.xpose.msra.mxu0 0.0
    %472 = vmatprep.subr.mxu0 0.0
    %473 = vmatpush1.xpose.msra.mxu0 0.0
    %474 = vmatprep.subr.mxu0 0.0
    %475 = vmatpush1.xpose.msra.mxu0 0.0
    %476 = vmatprep.subr.mxu0 0.0
    %477 = vmatpush1.xpose.msra.mxu0 0.0
    %478 = vmatprep.subr.mxu0 0.0
    %479 = vmatpush1.xpose.msra.mxu0 0.0
    %480 = vmatprep.subr.mxu0 0.0
    %481 = vmatpush1.xpose.msra.mxu0 0.0
    %482 = vmatprep.subr.mxu0 0.0
    %483 = vmatpush1.xpose.msra.mxu0 0.0
    %484 = vmatprep.subr.mxu0 0.0
    %485 = vmatpush1.xpose.msra.mxu0 0.0
    %486 = vmatprep.subr.mxu0 0.0
    %487 = vmatpush1.xpose.msra.mxu0 0.0
    %488 = vmatprep.subr.mxu0 0.0
    %489 = vmatpush1.xpose.msra.mxu0 0.0
    %490 = vmatprep.subr.mxu0 0.0
    %491 = vmatpush1.xpose.msra.mxu0 0.0
    %492 = vmatprep.subr.mxu0 0.0
    %493 = vmatpush1.xpose.msra.mxu0 0.0
    %494 = vmatprep.subr.mxu0 0.0
    %495 = vmatpush1.xpose.msra.mxu0 0.0
    %496 = vmatprep.subr.mxu0 0.0
    %497 = vmatpush1.xpose.msra.mxu0 0.0
    %498 = vmatprep.subr.mxu0 0.0
    %499 = vmatpush1.xpose.msra.mxu0 0.0
    %500 = vmatprep.subr.mxu0 0.0
    %501 = vmatpush1.xpose.msra.mxu0 0.0
    %502 = vmatprep.subr.mxu0 0.0
    %503 = vmatpush1.xpose.msra.mxu0 0.0
    %504 = vmatprep.subr.mxu0 0.0
    %505 = vmatpush1.xpose.msra.mxu0 0.0
    %506 = vmatprep.subr.mxu0 0.0
    %507 = vmatpush1.xpose.msra.mxu0 0.0
    %508 = vmatprep.subr.mxu0 0.0
    %509 = vmatpush1.xpose.msra.mxu0 0.0
    %510 = vmatprep.subr.mxu0 0.0
    %511 = vmatpush1.xpose.msra.mxu0 0.0
    %512 = vmatprep.subr.mxu0 0.0
    %513 = vmatpush1.xpose.msra.mxu0 0.0
    %514 = vmatprep.subr.mxu0 0.0
    %515 = vmatpush1.xpose.msra.mxu0 0.0
    %516 = vmatprep.mubr.f32.mxu0 0.0
    %517 = vmatmul.mubr.f32.gmra.mrb[0].mxu0 %v441
    %v518 = vpop.f32.mrb[0].mxu0
    %v519 = vadd.f32 %v451, %v518
    %v520 = vpop.f32.mrb[0].mxu0
    %521 = vdwg.mxu0
    %vm522 = vcmask 57344
    %523 = vst.msk [vmem:[#allocation9] sm:$0x1] %vm522, %v519
    // Predicated region
    $region58: #{mi_estimation_forward.1} parent=1 // pred_check
      _
    $region59: #{mi_estimation_forward.1} parent=1 // pred_check_branch
      %525 = sbr.rel (0) target = $region61
    $region60: #{mi_estimation_forward.1} parent=1 // pred_region
      %s527 = ssub.s32 16, 16
      %528 = vsyncadd [#allocation5], %s527
      %s530 = sshll.u32 [#allocation9], 4
      %s531 = int_to_ptr.vmem [resolvable:$true] %s530
      %533 = dma.vmem_to_hbm [thread:$0]  %s531, 16, %s11, [#allocation5]
    $region61: #{mi_estimation_forward.1} parent=1 // pred_fallthru
      _
    // Predicated region
    $region62: #{mi_estimation_forward.1} parent=1 // pred_check
      _
    $region63: #{mi_estimation_forward.1} parent=1 // pred_check_branch
      %535 = sbr.rel (0) target = $region65
    $region64: #{mi_estimation_forward.1} parent=1 // pred_region
      %536 = dma.done [#allocation5], 16
    $region65: #{mi_estimation_forward.1} parent=1 // pred_fallthru
      _
    %537 = vsyncpa [#allocation4], 1
    %538 = vsyncpa [#allocation7], 1
    %539 = vsyncpa [#allocation5], 1

</llo_original>
